<compile_context>
chip_gen: v7x
topology: tpu7x:2x2x1
jax: 0.10.0
libtpu: 0.0.40
codegen_flags: <defaults>
</compile_context>

<pallas_src>
import functools

import jax
import jax.numpy as jnp
from jax.experimental import pallas as pl
from jax.experimental.pallas import tpu as pltpu

_TILE_BYTES = 4 * 1024 * 1024  # ~4 MiB tiles: ~86% of HBM roofline, fewer grid steps


def _starrelu_kernel(sb_ref, x_ref, o_ref):
    # sb_ref: (2,) [scale, bias] scalars in SMEM
    # x_ref / o_ref: (tile_rows, lane) tiles in VMEM
    s = sb_ref[0]
    b = sb_ref[1]
    x = x_ref[...].astype(jnp.float32)   # f32 math (required on v5e, safe for bf16 I/O)
    r = jnp.maximum(x, 0.0)              # ReLU without materializing a zeros tile
    o_ref[...] = (s * (r * r) + b).astype(o_ref.dtype)


def _pointwise(v, s, b):
    """Plain-JAX reference path (used for tiny ragged tails / degenerate sizes)."""
    r = jnp.maximum(v.astype(jnp.float32), 0.0)
    return (s * (r * r) + b).astype(v.dtype)


def _pick_lane(total):
    """Largest lane width (multiple of 128) that divides `total`; 0 if none."""
    for lane in (1024, 512, 256, 128):
        if total % lane == 0:
            return lane
    return 0


def _dim_semantics():
    # "parallel" vs "arbitrary" is near-noise on single-TC chips (v5e/v6e); on
    # v7x only CORE_PARALLEL actually shards the row grid across the 2 TCs.
    try:
        kind = jax.devices()[0].device_kind.lower()
    except Exception:  # pragma: no cover - defensive
        kind = ""
    if ("v7" in kind or "7x" in kind) and hasattr(pltpu, "CORE_PARALLEL"):
        return (pltpu.CORE_PARALLEL,)
    return ("parallel",)


@functools.partial(jax.jit, static_argnames=("donate_input",))
def starrelu(x, scale, bias, donate_input=False):
    """out = scale * relu(x)**2 + bias, elementwise with scalar scale/bias.

    x: any shape (e.g. NCHW); scale, bias: shape-(1,) parameters.
    """
    shape = x.shape
    total = x.size
    dtype = x.dtype

    s = jnp.asarray(scale, jnp.float32).reshape(())
    b = jnp.asarray(bias, jnp.float32).reshape(())
    sb = jnp.stack([s, b])  # (2,) packed scalar params for SMEM

    flat = x.reshape(-1)

    # --- choose a lane-dense layout with NO pad/trim copies -----------------
    lane = _pick_lane(total)
    if lane:
        main, rem = total, 0
    else:
        # Size not a multiple of 128: run the kernel on the 128-aligned prefix
        # and finish the (< 128 element) tail in plain JAX.
        lane = 128
        main = (total // 128) * 128
        rem = total - main

    if main == 0:
        # Degenerate tiny input: nothing for the kernel to do.
        return _pointwise(x, s, b)

    m = main // lane
    itemsize = jnp.dtype(dtype).itemsize
    # ~4 MiB tiles (1024 rows f32 / 2048 rows bf16 at lane=1024); always a
    # multiple of 8 rows.  2x(in)+2x(out) buffers = 16 MiB pipeline footprint.
    tile_rows = max(8, _TILE_BYTES // (lane * itemsize))
    tr = min(tile_rows, m)  # full-extent block for small inputs (valid
    #                         exception to the (8,128) divisibility rule)

    x2d = (flat if rem == 0 else flat[:main]).reshape(m, lane)

    grid = (pl.cdiv(m, tr),)  # last block may be partial; Pallas masks the
    #                           out-of-range rows of the store.
    out_main = pl.pallas_call(
        _starrelu_kernel,
        out_shape=jax.ShapeDtypeStruct((m, lane), dtype),
        grid=grid,
        in_specs=[
            pl.BlockSpec(memory_space=pltpu.SMEM),       # (scale, bias)
            pl.BlockSpec((tr, lane), lambda i: (i, 0)),  # input tile
        ],
        out_specs=pl.BlockSpec((tr, lane), lambda i: (i, 0)),
        compiler_params=pltpu.CompilerParams(
            dimension_semantics=_dim_semantics(),
            vmem_limit_bytes=32 * 1024 * 1024,  # v5e default scoped limit is 16 MiB
        ),
        # Reuse x's HBM buffer for the output when the caller donates x.
        input_output_aliases={1: 0} if donate_input else {},
    )(sb, x2d)

    if rem:
        tail = _pointwise(flat[main:], s, b)              # < 128 elements
        out_flat = jnp.concatenate([out_main.reshape(-1), tail])
        return out_flat.reshape(shape)
    return out_main.reshape(shape)


if __name__ == "__main__":
    key = jax.random.PRNGKey(0)
    x = jax.random.normal(key, (2, 4, 16, 16), dtype=jnp.float32)

    # Deterministic parameter init matching StarReLU.__init__ defaults:
    # scale = 1.0 * ones(1), bias = 0.0 * ones(1)
    scale = jnp.ones((1,), dtype=jnp.float32) * 1.0
    bias = jnp.ones((1,), dtype=jnp.float32) * 0.0

    out = starrelu(x, scale, bias)
    out = jax.block_until_ready(out)

    ref = scale.reshape(1, 1, 1) * jnp.maximum(x, 0.0) ** 2 + bias.reshape(1, 1, 1)
    assert out.shape == x.shape
    assert jnp.allclose(out, ref, atol=1e-6), "mismatch vs reference"

    # Extra sanity check on a ragged (non-multiple-of-128) shape.
    x2 = jax.random.normal(jax.random.PRNGKey(1), (2, 3, 5, 7), dtype=jnp.float32)
    out2 = jax.block_until_ready(starrelu(x2, scale, bias))
    ref2 = scale.reshape(1, 1, 1) * jnp.maximum(x2, 0.0) ** 2 + bias.reshape(1, 1, 1)
    assert out2.shape == x2.shape
    assert jnp.allclose(out2, ref2, atol=1e-6), "mismatch vs reference (ragged)"

    print("KERNEL_OK")
</pallas_src>

<mosaic_0001>
module attributes {stable_mosaic.version = 11 : i64} {
  func.func @_starrelu_kernel(%arg0: i32, %arg1: memref<2xf32, #tpu.memory_space<smem>>, %arg2: memref<2x1024xf32, #tpu.memory_space<vmem>>, %arg3: memref<2x1024xf32, #tpu.memory_space<vmem>>) attributes {dimension_semantics = [#tpu.dimension_semantics<parallel>], iteration_bounds = array<i64: 1>, scalar_prefetch = 0 : i64, scratch_operands = 0 : i64, tpu.core_type = #tpu.core_type<tc>, window_params = [{transform_indices = @transform_0, window_bounds = array<i64: 2>}, {transform_indices = @transform_1, window_bounds = array<i64: 2, 1024>}, {transform_indices = @transform_2, window_bounds = array<i64: 2, 1024>}]} {
    %c0 = arith.constant 0 : index
    %0 = memref.load %arg1[%c0] : memref<2xf32, #tpu.memory_space<smem>>
    %c1 = arith.constant 1 : index
    %1 = memref.load %arg1[%c1] : memref<2xf32, #tpu.memory_space<smem>>
    %c0_0 = arith.constant 0 : index
    %c0_1 = arith.constant 0 : index
    %2 = vector.load %arg2[%c0_0, %c0_1] : memref<2x1024xf32, #tpu.memory_space<vmem>>, vector<2x1024xf32>
    %cst = arith.constant 0.000000e+00 : f32
    %3 = vector.broadcast %cst : f32 to vector<2x1024xf32>
    %4 = arith.maximumf %2, %3 : vector<2x1024xf32>
    %5 = arith.mulf %4, %4 : vector<2x1024xf32>
    %6 = vector.broadcast %0 : f32 to vector<2x1024xf32>
    %7 = arith.mulf %6, %5 : vector<2x1024xf32>
    %8 = vector.broadcast %1 : f32 to vector<2x1024xf32>
    %9 = arith.addf %7, %8 : vector<2x1024xf32>
    %c0_2 = arith.constant 0 : index
    %c0_3 = arith.constant 0 : index
    %10 = vector.load %arg3[%c0_2, %c0_3] : memref<2x1024xf32, #tpu.memory_space<vmem>>, vector<2x1024xf32>
    tpu.vector_store %arg3[%c0_2, %c0_3], %9 {strides = array<i32>} : memref<2x1024xf32, #tpu.memory_space<vmem>>, vector<2x1024xf32>,
    return
  }
  func.func @transform_0(%arg0: i32) -> i32 {
    %c0_i32 = arith.constant 0 : i32
    %c0_i32_0 = arith.constant 0 : i32
    return %c0_i32 : i32
  }
  func.func @transform_1(%arg0: i32) -> (i32, i32) {
    %c0_i32 = arith.constant 0 : i32
    %c0_i32_0 = arith.constant 0 : i32
    return %arg0, %c0_i32 : i32, i32
  }
  func.func @transform_2(%arg0: i32) -> (i32, i32) {
    %c0_i32 = arith.constant 0 : i32
    %c0_i32_0 = arith.constant 0 : i32
    return %arg0, %c0_i32 : i32, i32
  }
}

</mosaic_0001>

<llo_original>
// kernel: starrelu.1
$region0: #{starrelu.1}
  #allocation0 [shape = 'u32[]', space=smem, size = 0x4, offset = 0x4, fixed_abs, tag = 'smem constant byte address 0x4 - core index']
  #allocation1 [shape = 'u32[144,128]{1,0:T(1,128)}', space=vmem, size = 0x12000, scoped, tag = 'internal scratch']
  %s0 = inlined_call_operand.vmem [shape: f32[2], index: 0, kind: input, shape index: {}]
  %s1 = inlined_call_operand.vmem [shape: f32[2,1024], index: 1, kind: input, shape index: {}]
  %s2 = inlined_call_operand.vmem [shape: f32[2,1024], index: 2, kind: output, shape index: {}]
  %s3 = sld [smem:[#allocation0]]
  $region22: #{starrelu.1} parent=0
    _
  %s5 = ssub.s32 1, %s3
  %s6 = scalar_select 0, %s5, %s3
  $region1: #{starrelu.1} parent=0
    #allocation2 [shape = 'u8[512]{0}', space=smem, size = 0x200, scoped, tag = 'input window, operand 0, single buffered']
    #allocation3 [shape = 's32[1]{0}', space=sflag, size = 0x4, scoped, tag = 'scoped memory for starrelu.1']
    %7 = vsyncpa [#allocation3], 0
    // Predicated region
    $region2: #{starrelu.1} parent=1 // pred_check
      _
    $region3: #{starrelu.1} parent=1 // pred_check_branch
      %9 = sbr.rel (0) target = $region5
    $region4: #{starrelu.1} parent=1 // pred_region
      %s11 = ssub.s32 16, 16
      %12 = vsyncadd [#allocation3], %s11
      %s14 = sshll.u32 %s0, 4
      %s15 = int_to_ptr.vmem [resolvable:$true] %s14
      %17 = dma.vmem_to_smem %s15, 16, [#allocation2], [#allocation3]
    $region5: #{starrelu.1} parent=1 // pred_fallthru
      _
    // Predicated region
    $region6: #{starrelu.1} parent=1 // pred_check
      _
    $region7: #{starrelu.1} parent=1 // pred_check_branch
      %19 = sbr.rel (0) target = $region9
    $region8: #{starrelu.1} parent=1 // pred_region
      _
    $region9: #{starrelu.1} parent=1 // pred_fallthru
      _
    // Predicated region
    $region10: #{starrelu.1} parent=1 // pred_check
      _
    $region11: #{starrelu.1} parent=1 // pred_check_branch
      %21 = sbr.rel (0) target = $region13
    $region12: #{starrelu.1} parent=1 // pred_region
      %22 = dma.done [#allocation3], 16
    $region13: #{starrelu.1} parent=1 // pred_fallthru
      _
    %23 = sfence
    %s24 = sld [smem:[#allocation2]]
    %s25 = sld [smem:[#allocation2 + $0x1]]
    %v26 = vld [vmem:[%s1] sm:$0xff]
    %v27 = vld [vmem:[%s1 + $0x8] sm:$0xff]
    %v28 = vmax.f32 %v26, 0.0
    %v29 = vmax.f32 %v27, 0.0
    %v30 = vmul.f32 %v28, %v28
    %v31 = vmul.f32 %v29, %v29
    %v32 = vstv %s24
    %v33 = vmul.f32 %v32, %v30
    %v34 = vmul.f32 %v32, %v31
    %v35 = vstv %s25
    %v36 = vadd.f32 %v33, %v35
    %v37 = vadd.f32 %v34, %v35
    %38 = vst [vmem:[%s2] sm:$0xff] %v36
    %39 = vst [vmem:[%s2 + $0x8] sm:$0xff] %v37
    // Predicated region
    $region14: #{starrelu.1} parent=1 // pred_check
      _
    $region15: #{starrelu.1} parent=1 // pred_check_branch
      %41 = sbr.rel (0) target = $region17
    $region16: #{starrelu.1} parent=1 // pred_region
      _
    $region17: #{starrelu.1} parent=1 // pred_fallthru
      _
    // Predicated region
    $region18: #{starrelu.1} parent=1 // pred_check
      _
    $region19: #{starrelu.1} parent=1 // pred_check_branch
      %43 = sbr.rel (0) target = $region21
    $region20: #{starrelu.1} parent=1 // pred_region
      _
    $region21: #{starrelu.1} parent=1 // pred_fallthru
      _
    %44 = vsyncpa [#allocation3], 1

</llo_original>
